<compile_context>
chip_gen: v7x
topology: tpu7x:2x2x1
jax: 0.10.0
libtpu: 0.0.40
codegen_flags: <defaults>
</compile_context>

<pallas_src>
import functools

import jax
import jax.numpy as jnp
from jax.experimental import pallas as pl
from jax.experimental.pallas import tpu as pltpu

_EPS = 1e-8             # torch.nn.CosineSimilarity default eps
_MAX_LANES = 16 * 1024  # lane width L cap; one tile covers 8*L batch rows
                        # (double-buffered f32 inputs ~= 6 MiB at the cap)


def _round_up(x, m):
    return ((x + m - 1) // m) * m


def _atan_nonneg(x):
    """float32 atan for x >= 0 (Cephes-style range reduction + degree-7 odd poly)."""
    big = x > 2.414213562373095    # tan(3*pi/8)
    mid = x > 0.4142135623730951   # tan(pi/8)
    y0 = jnp.where(big, jnp.float32(jnp.pi / 2),
                   jnp.where(mid, jnp.float32(jnp.pi / 4), jnp.float32(0.0)))
    xr = jnp.where(big, -1.0 / x, jnp.where(mid, (x - 1.0) / (x + 1.0), x))
    z = xr * xr
    p = ((((8.05374449538e-2 * z - 1.38776856032e-1) * z
           + 1.99777106478e-1) * z - 3.33329491539e-1) * z) * xr + xr
    return y0 + p


def _acos(c):
    # acos(c) = 2 * atan(sqrt((1 - c) / (1 + c))); the divide is fused into an
    # EUP rsqrt.  c = -1 resolves to pi via the big-argument branch; |c| > 1 ->
    # NaN (matches torch.acos).
    t = jnp.sqrt(1.0 - c) * jax.lax.rsqrt(1.0 + c)
    return 2.0 * _atan_nonneg(t)


def _angular_distance_kernel(n_total, blocks_per_core,
                             gaze_ref, label_ref, out_ref):
    c = pl.program_id(0)   # "core" axis (parallel)
    i = pl.program_id(1)   # reduction axis over N tiles (arbitrary, last)

    @pl.when(i == 0)
    def _init():
        out_ref[...] = jnp.zeros_like(out_ref)

    d = gaze_ref.shape[0]
    lanes = gaze_ref.shape[2]

    # Dot product and squared norms as explicit per-component FMAs over D.
    # All intermediates are dense (8, L) f32 tiles (full vreg occupancy).
    dot = g2 = l2 = None
    for k in range(d):
        gk = gaze_ref[k].astype(jnp.float32)    # (8, L)
        lk = label_ref[k].astype(jnp.float32)   # (8, L)
        if k == 0:
            dot, g2, l2 = gk * lk, gk * gk, lk * lk
        else:
            dot, g2, l2 = dot + gk * lk, g2 + gk * gk, l2 + lk * lk

    # cosine similarity: dot / max(||g||*||l||, eps) == dot * rsqrt(max(g2*l2, eps^2))
    cos = dot * jax.lax.rsqrt(jnp.maximum(g2 * l2, jnp.float32(_EPS * _EPS)))

    deg = _acos(cos) * jnp.float32(180.0 / jnp.pi)     # (8, L)

    # Mask padded batch rows (zero-padded rows would each add 90 degrees).
    row0 = (c * blocks_per_core + i) * 8
    sub = jax.lax.broadcasted_iota(jnp.int32, deg.shape, 0)
    lane = jax.lax.broadcasted_iota(jnp.int32, deg.shape, 1)
    col = (row0 + sub) * lanes + lane
    deg = jnp.where(col < n_total, deg, jnp.float32(0.0))

    # Per-sublane partial sums accumulated into the resident (8, 128) output
    # block (broadcast across lanes; the wrapper reads column 0).  The lane
    # reduce runs on the XLU slot, off the VALU critical path.
    out_ref[...] += jnp.sum(deg, axis=1, keepdims=True)


def angular_distance(gaze, label, *, max_lanes=_MAX_LANES):
    """Pallas equivalent of AngularDistance().forward(gaze, label) -> scalar degrees."""
    assert gaze.shape == label.shape and gaze.ndim == 2
    n, d = gaze.shape

    # Use both cores only when there is more than one minimal (8, 128) tile of
    # rows; otherwise a second core is pure padding + grid overhead.
    num_cores = 2 if n > 8 * 128 else 1

    # Lane width L (multiple of 128); one tile covers 8*L batch rows.
    lanes = min(max_lanes, _round_up(pl.cdiv(n, num_cores * 8), 128))
    lanes = max(lanes, 128)
    span = num_cores * 8 * lanes
    n_pad = _round_up(n, span)
    blocks_per_core = n_pad // (8 * lanes) // num_cores

    # Layout plumbing: (N, D) -> lane-dense (D, N) -> (D, N/L, L).  Kept in the
    # caller's dtype (bf16 ingest halves HBM bytes); cast to f32 inside kernel.
    def _prep(x):
        x = jnp.pad(x.T, ((0, 0), (0, n_pad - n)))
        return x.reshape(d, n_pad // lanes, lanes)

    g_t, l_t = _prep(gaze), _prep(label)

    in_map = lambda c, i: (0, c * blocks_per_core + i, 0)
    kernel = functools.partial(_angular_distance_kernel, n, blocks_per_core)

    out = pl.pallas_call(
        kernel,
        out_shape=jax.ShapeDtypeStruct((num_cores * 8, 128), jnp.float32),
        grid=(num_cores, blocks_per_core),
        in_specs=[
            pl.BlockSpec((d, 8, lanes), in_map),
            pl.BlockSpec((d, 8, lanes), in_map),
        ],
        out_specs=pl.BlockSpec((8, 128), lambda c, i: (c, 0)),
        compiler_params=pltpu.CompilerParams(
            dimension_semantics=("parallel", "arbitrary"),
            vmem_limit_bytes=32 * 1024 * 1024,
        ),
    )(g_t, l_t)

    # Each core's (8, 128) block holds per-sublane partial sums broadcast over lanes.
    return jnp.sum(out[:, 0])


def _reference(gaze, label):
    dot = jnp.sum(gaze * label, axis=1)
    denom = jnp.maximum(jnp.linalg.norm(gaze, axis=1) * jnp.linalg.norm(label, axis=1), _EPS)
    return jnp.sum(jnp.arccos(dot / denom) * 180.0 / jnp.pi, axis=0)


if __name__ == "__main__":
    key = jax.random.PRNGKey(0)
    k1, k2, k3, k4 = jax.random.split(key, 4)

    # Small shape matching the module: batch of 8 gaze vectors, 3-D each.
    N, D = 8, 3
    gaze = jax.random.normal(k1, (N, D), dtype=jnp.float32)
    label = jax.random.normal(k2, (N, D), dtype=jnp.float32)
    out = angular_distance(gaze, label)
    jax.block_until_ready(out)
    ref = _reference(gaze, label)
    assert jnp.allclose(out, ref, rtol=1e-3, atol=1e-2), (out, ref)

    # Multi-tile + dual-core + remainder-masking path (several grid steps per core).
    N2 = 3000
    gaze2 = jax.random.normal(k3, (N2, D), dtype=jnp.float32)
    label2 = jax.random.normal(k4, (N2, D), dtype=jnp.float32)
    out2 = angular_distance(gaze2, label2, max_lanes=128)
    jax.block_until_ready(out2)
    ref2 = _reference(gaze2, label2)
    assert jnp.allclose(out2, ref2, rtol=1e-3, atol=1e-1), (out2, ref2)

    print("KERNEL_OK")
</pallas_src>

<mosaic_0001>
module attributes {stable_mosaic.version = 11 : i64} {
  func.func @_angular_distance_kernel(%arg0: i32, %arg1: i32, %arg2: memref<3x8x128xf32, #tpu.memory_space<vmem>>, %arg3: memref<3x8x128xf32, #tpu.memory_space<vmem>>, %arg4: memref<8x128xf32, #tpu.memory_space<vmem>>) attributes {dimension_semantics = [#tpu.dimension_semantics<parallel>, #tpu.dimension_semantics<arbitrary>], iteration_bounds = array<i64: 1, 1>, scalar_prefetch = 0 : i64, scratch_operands = 0 : i64, tpu.core_type = #tpu.core_type<tc>, window_params = [{transform_indices = @transform_0, window_bounds = array<i64: 3, 8, 128>}, {transform_indices = @transform_1, window_bounds = array<i64: 3, 8, 128>}, {transform_indices = @transform_2, window_bounds = array<i64: 8, 128>}]} {
    %c0_i32 = arith.constant 0 : i32
    %0 = arith.cmpi eq, %arg1, %c0_i32 : i32
    %1 = arith.extui %0 : i1 to i32
    %c0_i32_0 = arith.constant 0 : i32
    %2 = arith.cmpi ne, %1, %c0_i32_0 : i32
    scf.if %2 {
      %cst_39 = arith.constant 0.000000e+00 : f32
      %99 = vector.broadcast %cst_39 : f32 to vector<8x128xf32>
      %c0_40 = arith.constant 0 : index
      %c0_41 = arith.constant 0 : index
      %100 = vector.load %arg4[%c0_40, %c0_41] : memref<8x128xf32, #tpu.memory_space<vmem>>, vector<8x128xf32>
      tpu.vector_store %arg4[%c0_40, %c0_41], %99 {strides = array<i32>} : memref<8x128xf32, #tpu.memory_space<vmem>>, vector<8x128xf32>,
    } else {
    }
    %c0 = arith.constant 0 : index
    %c0_1 = arith.constant 0 : index
    %c0_2 = arith.constant 0 : index
    %3 = vector.load %arg2[%c0, %c0_1, %c0_2] : memref<3x8x128xf32, #tpu.memory_space<vmem>>, vector<1x8x128xf32>
    %4 = vector.shape_cast %3 : vector<1x8x128xf32> to vector<8x128xf32>
    %c0_3 = arith.constant 0 : index
    %c0_4 = arith.constant 0 : index
    %c0_5 = arith.constant 0 : index
    %5 = vector.load %arg3[%c0_3, %c0_4, %c0_5] : memref<3x8x128xf32, #tpu.memory_space<vmem>>, vector<1x8x128xf32>
    %6 = vector.shape_cast %5 : vector<1x8x128xf32> to vector<8x128xf32>
    %7 = arith.mulf %4, %6 : vector<8x128xf32>
    %8 = arith.mulf %4, %4 : vector<8x128xf32>
    %9 = arith.mulf %6, %6 : vector<8x128xf32>
    %c1 = arith.constant 1 : index
    %c0_6 = arith.constant 0 : index
    %c0_7 = arith.constant 0 : index
    %10 = vector.load %arg2[%c1, %c0_6, %c0_7] : memref<3x8x128xf32, #tpu.memory_space<vmem>>, vector<1x8x128xf32>
    %11 = vector.shape_cast %10 : vector<1x8x128xf32> to vector<8x128xf32>
    %c1_8 = arith.constant 1 : index
    %c0_9 = arith.constant 0 : index
    %c0_10 = arith.constant 0 : index
    %12 = vector.load %arg3[%c1_8, %c0_9, %c0_10] : memref<3x8x128xf32, #tpu.memory_space<vmem>>, vector<1x8x128xf32>
    %13 = vector.shape_cast %12 : vector<1x8x128xf32> to vector<8x128xf32>
    %14 = arith.mulf %11, %13 : vector<8x128xf32>
    %15 = arith.addf %7, %14 : vector<8x128xf32>
    %16 = arith.mulf %11, %11 : vector<8x128xf32>
    %17 = arith.addf %8, %16 : vector<8x128xf32>
    %18 = arith.mulf %13, %13 : vector<8x128xf32>
    %19 = arith.addf %9, %18 : vector<8x128xf32>
    %c2 = arith.constant 2 : index
    %c0_11 = arith.constant 0 : index
    %c0_12 = arith.constant 0 : index
    %20 = vector.load %arg2[%c2, %c0_11, %c0_12] : memref<3x8x128xf32, #tpu.memory_space<vmem>>, vector<1x8x128xf32>
    %21 = vector.shape_cast %20 : vector<1x8x128xf32> to vector<8x128xf32>
    %c2_13 = arith.constant 2 : index
    %c0_14 = arith.constant 0 : index
    %c0_15 = arith.constant 0 : index
    %22 = vector.load %arg3[%c2_13, %c0_14, %c0_15] : memref<3x8x128xf32, #tpu.memory_space<vmem>>, vector<1x8x128xf32>
    %23 = vector.shape_cast %22 : vector<1x8x128xf32> to vector<8x128xf32>
    %24 = arith.mulf %21, %23 : vector<8x128xf32>
    %25 = arith.addf %15, %24 : vector<8x128xf32>
    %26 = arith.mulf %21, %21 : vector<8x128xf32>
    %27 = arith.addf %17, %26 : vector<8x128xf32>
    %28 = arith.mulf %23, %23 : vector<8x128xf32>
    %29 = arith.addf %19, %28 : vector<8x128xf32>
    %30 = arith.mulf %27, %29 : vector<8x128xf32>
    %cst = arith.constant 1.000000e-16 : f32
    %31 = vector.broadcast %cst : f32 to vector<8x128xf32>
    %32 = arith.maximumf %30, %31 : vector<8x128xf32>
    %33 = math.rsqrt %32 : vector<8x128xf32>
    %34 = arith.mulf %25, %33 : vector<8x128xf32>
    %cst_16 = arith.constant 1.000000e+00 : f32
    %35 = vector.broadcast %cst_16 : f32 to vector<8x128xf32>
    %36 = arith.subf %35, %34 : vector<8x128xf32>
    %37 = math.sqrt %36 : vector<8x128xf32>
    %cst_17 = arith.constant 1.000000e+00 : f32
    %38 = vector.broadcast %cst_17 : f32 to vector<8x128xf32>
    %39 = arith.addf %38, %34 : vector<8x128xf32>
    %40 = math.rsqrt %39 : vector<8x128xf32>
    %41 = arith.mulf %37, %40 : vector<8x128xf32>
    %cst_18 = arith.constant 2.41421366 : f32
    %42 = vector.broadcast %cst_18 : f32 to vector<8x128xf32>
    %43 = arith.cmpf ogt, %41, %42 : vector<8x128xf32>
    %cst_19 = arith.constant 0.414213568 : f32
    %44 = vector.broadcast %cst_19 : f32 to vector<8x128xf32>
    %45 = arith.cmpf ogt, %41, %44 : vector<8x128xf32>
    %cst_20 = arith.constant 0.785398185 : f32
    %cst_21 = arith.constant 0.000000e+00 : f32
    %46 = vector.broadcast %cst_20 : f32 to vector<8x128xf32>
    %47 = vector.broadcast %cst_21 : f32 to vector<8x128xf32>
    %48 = arith.select %45, %46, %47 : vector<8x128xi1>, vector<8x128xf32>
    %cst_22 = arith.constant 1.57079637 : f32
    %49 = vector.broadcast %cst_22 : f32 to vector<8x128xf32>
    %50 = arith.select %43, %49, %48 : vector<8x128xi1>, vector<8x128xf32>
    %cst_23 = arith.constant -1.000000e+00 : f32
    %51 = vector.broadcast %cst_23 : f32 to vector<8x128xf32>
    %52 = arith.divf %51, %41 : vector<8x128xf32>
    %cst_24 = arith.constant 1.000000e+00 : f32
    %53 = vector.broadcast %cst_24 : f32 to vector<8x128xf32>
    %54 = arith.subf %41, %53 : vector<8x128xf32>
    %cst_25 = arith.constant 1.000000e+00 : f32
    %55 = vector.broadcast %cst_25 : f32 to vector<8x128xf32>
    %56 = arith.addf %41, %55 : vector<8x128xf32>
    %57 = arith.divf %54, %56 : vector<8x128xf32>
    %58 = arith.select %45, %57, %41 : vector<8x128xi1>, vector<8x128xf32>
    %59 = arith.select %43, %52, %58 : vector<8x128xi1>, vector<8x128xf32>
    %60 = arith.mulf %59, %59 : vector<8x128xf32>
    %cst_26 = arith.constant 0.0805374458 : f32
    %61 = vector.broadcast %cst_26 : f32 to vector<8x128xf32>
    %62 = arith.mulf %61, %60 : vector<8x128xf32>
    %cst_27 = arith.constant 0.138776854 : f32
    %63 = vector.broadcast %cst_27 : f32 to vector<8x128xf32>
    %64 = arith.subf %62, %63 : vector<8x128xf32>
    %65 = arith.mulf %64, %60 : vector<8x128xf32>
    %cst_28 = arith.constant 0.199777111 : f32
    %66 = vector.broadcast %cst_28 : f32 to vector<8x128xf32>
    %67 = arith.addf %65, %66 : vector<8x128xf32>
    %68 = arith.mulf %67, %60 : vector<8x128xf32>
    %cst_29 = arith.constant 0.333329499 : f32
    %69 = vector.broadcast %cst_29 : f32 to vector<8x128xf32>
    %70 = arith.subf %68, %69 : vector<8x128xf32>
    %71 = arith.mulf %70, %60 : vector<8x128xf32>
    %72 = arith.mulf %71, %59 : vector<8x128xf32>
    %73 = arith.addf %72, %59 : vector<8x128xf32>
    %74 = arith.addf %50, %73 : vector<8x128xf32>
    %cst_30 = arith.constant 2.000000e+00 : f32
    %75 = vector.broadcast %cst_30 : f32 to vector<8x128xf32>
    %76 = arith.mulf %75, %74 : vector<8x128xf32>
    %cst_31 = arith.constant 57.2957802 : f32
    %77 = vector.broadcast %cst_31 : f32 to vector<8x128xf32>
    %78 = arith.mulf %76, %77 : vector<8x128xf32>
    %c1_i32 = arith.constant 1 : i32
    %79 = arith.muli %arg0, %c1_i32 : i32
    %80 = arith.addi %79, %arg1 : i32
    %c8_i32 = arith.constant 8 : i32
    %81 = arith.muli %80, %c8_i32 : i32
    %82 = tpu.iota {dimensions = array<i32: 0>} : vector<8x128xi32>
    %83 = tpu.iota {dimensions = array<i32: 1>} : vector<8x128xi32>
    %84 = vector.broadcast %81 : i32 to vector<8x128xi32>
    %85 = arith.addi %84, %82 : vector<8x128xi32>
    %c128_i32 = arith.constant 128 : i32
    %86 = vector.broadcast %c128_i32 : i32 to vector<8x128xi32>
    %87 = arith.muli %85, %86 : vector<8x128xi32>
    %88 = arith.addi %87, %83 : vector<8x128xi32>
    %c8_i32_32 = arith.constant 8 : i32
    %89 = vector.broadcast %c8_i32_32 : i32 to vector<8x128xi32>
    %90 = arith.cmpi slt, %88, %89 : vector<8x128xi32>
    %cst_33 = arith.constant 0.000000e+00 : f32
    %91 = vector.broadcast %cst_33 : f32 to vector<8x128xf32>
    %92 = arith.select %90, %78, %91 : vector<8x128xi1>, vector<8x128xf32>
    %c0_34 = arith.constant 0 : index
    %c0_35 = arith.constant 0 : index
    %93 = vector.load %arg4[%c0_34, %c0_35] : memref<8x128xf32, #tpu.memory_space<vmem>>, vector<8x128xf32>
    %cst_36 = arith.constant dense<0.000000e+00> : vector<8xf32>
    %94 = vector.multi_reduction <add>, %92, %cst_36 [1] : vector<8x128xf32> to vector<8xf32>
    %95 = vector.shape_cast %94 : vector<8xf32> to vector<8x1xf32>
    %96 = vector.broadcast %95 : vector<8x1xf32> to vector<8x128xf32>
    %97 = arith.addf %93, %96 : vector<8x128xf32>
    %c0_37 = arith.constant 0 : index
    %c0_38 = arith.constant 0 : index
    %98 = vector.load %arg4[%c0_37, %c0_38] : memref<8x128xf32, #tpu.memory_space<vmem>>, vector<8x128xf32>
    tpu.vector_store %arg4[%c0_37, %c0_38], %97 {strides = array<i32>} : memref<8x128xf32, #tpu.memory_space<vmem>>, vector<8x128xf32>,
    return
  }
  func.func @transform_0(%arg0: i32, %arg1: i32) -> (i32, i32, i32) {
    %c1_i32 = arith.constant 1 : i32
    %0 = arith.muli %arg0, %c1_i32 : i32
    %1 = arith.addi %0, %arg1 : i32
    %c0_i32 = arith.constant 0 : i32
    %c0_i32_0 = arith.constant 0 : i32
    %c0_i32_1 = arith.constant 0 : i32
    return %c0_i32, %1, %c0_i32_0 : i32, i32, i32
  }
  func.func @transform_1(%arg0: i32, %arg1: i32) -> (i32, i32, i32) {
    %c1_i32 = arith.constant 1 : i32
    %0 = arith.muli %arg0, %c1_i32 : i32
    %1 = arith.addi %0, %arg1 : i32
    %c0_i32 = arith.constant 0 : i32
    %c0_i32_0 = arith.constant 0 : i32
    %c0_i32_1 = arith.constant 0 : i32
    return %c0_i32, %1, %c0_i32_0 : i32, i32, i32
  }
  func.func @transform_2(%arg0: i32, %arg1: i32) -> (i32, i32) {
    %c0_i32 = arith.constant 0 : i32
    %c0_i32_0 = arith.constant 0 : i32
    return %arg0, %c0_i32 : i32, i32
  }
}

</mosaic_0001>

<llo_original>
// kernel: tpu_custom_call.1
$region0: #{tpu_custom_call.1}
  #allocation0 [shape = 'u32[]', space=smem, size = 0x4, offset = 0x4, fixed_abs, tag = 'smem constant byte address 0x4 - core index']
  #allocation1 [shape = 'u32[144,128]{1,0:T(1,128)}', space=vmem, size = 0x12000, scoped, tag = 'internal scratch']
  %s0 = inlined_call_operand.hbm [shape: f32[3,8,128], index: 0, kind: input, shape index: {}]
  %s1 = inlined_call_operand.hbm [shape: f32[3,8,128], index: 1, kind: input, shape index: {}]
  %s2 = inlined_call_operand.hbm [shape: f32[8,128], index: 2, kind: output, shape index: {}]
  %s3 = sld [smem:[#allocation0]]
  $region30: #{tpu_custom_call.1} parent=0
    _
  %s5 = ssub.s32 1, %s3
  %s6 = scalar_select 0, %s5, %s3
  $region1: #{tpu_custom_call.1} parent=0
    #allocation2 [shape = 'u8[12288]{0}', space=vmem, size = 0x3000, scoped, tag = 'input window, operand 0, single buffered']
    #allocation3 [shape = 's32[1]{0}', space=sflag, size = 0x4, scoped, tag = 'scoped memory for tpu_custom_call.1']
    #allocation4 [shape = 's32[1]{0}', space=sflag, size = 0x4, scoped, tag = 'scoped memory for tpu_custom_call.1']
    #allocation5 [shape = 'u8[12288]{0}', space=vmem, size = 0x3000, scoped, tag = 'input window, operand 1, single buffered']
    #allocation6 [shape = 's32[1]{0}', space=sflag, size = 0x4, scoped, tag = 'scoped memory for tpu_custom_call.1']
    #allocation7 [shape = 'u8[4096]{0}', space=vmem, size = 0x1000, scoped, tag = 'output window, operand 0, single buffered']
    %7 = vsyncpa [#allocation3], 0
    %8 = vsyncpa [#allocation6], 0
    %9 = vsyncpa [#allocation4], 0
    // Predicated region
    $region2: #{tpu_custom_call.1} parent=1 // pred_check
      _
    $region3: #{tpu_custom_call.1} parent=1 // pred_check_branch
      %11 = sbr.rel (0) target = $region5
    $region4: #{tpu_custom_call.1} parent=1 // pred_region
      %s12 = sadd.s32 0, 0
      %s14 = ssub.s32 384, 384
      %15 = vsyncadd [#allocation3], %s14
      %s16 = smul.addr %s12, 128
      %s17 = scalar_lea.hbm %s0, %s16
      %s18 = sshll.u32 [#allocation2], 4
      %s19 = int_to_ptr.vmem [resolvable:$true] %s18
      %24 = dma.hbm_to_vmem [thread:$0]  %s17, 384, %s19, [#allocation3], 128, 128, 8
    $region5: #{tpu_custom_call.1} parent=1 // pred_fallthru
      _
    // Predicated region
    $region6: #{tpu_custom_call.1} parent=1 // pred_check
      _
    $region7: #{tpu_custom_call.1} parent=1 // pred_check_branch
      %26 = sbr.rel (0) target = $region9
    $region8: #{tpu_custom_call.1} parent=1 // pred_region
      %s27 = sadd.s32 0, 0
      %s29 = ssub.s32 384, 384
      %30 = vsyncadd [#allocation6], %s29
      %s31 = smul.addr %s27, 128
      %s32 = scalar_lea.hbm %s1, %s31
      %s33 = sshll.u32 [#allocation5], 4
      %s34 = int_to_ptr.vmem [resolvable:$true] %s33
      %39 = dma.hbm_to_vmem [thread:$0]  %s32, 384, %s34, [#allocation6], 128, 128, 8
    $region9: #{tpu_custom_call.1} parent=1 // pred_fallthru
      _
    // Predicated region
    $region10: #{tpu_custom_call.1} parent=1 // pred_check
      _
    $region11: #{tpu_custom_call.1} parent=1 // pred_check_branch
      %41 = sbr.rel (0) target = $region13
    $region12: #{tpu_custom_call.1} parent=1 // pred_region
      %42 = dma.done [#allocation3], 384
    $region13: #{tpu_custom_call.1} parent=1 // pred_fallthru
      _
    // Predicated region
    $region14: #{tpu_custom_call.1} parent=1 // pred_check
      _
    $region15: #{tpu_custom_call.1} parent=1 // pred_check_branch
      %44 = sbr.rel (0) target = $region17
    $region16: #{tpu_custom_call.1} parent=1 // pred_region
      %45 = dma.done [#allocation6], 384
    $region17: #{tpu_custom_call.1} parent=1 // pred_fallthru
      _
    %s46 = sadd.s32 0, 0
    %s47 = sadd.s32 0, 0
    %p48 = scmp.eq.s32.totalorder 0, 0
    // Predicated region
    $region18: #{tpu_custom_call.1} parent=1 // pred_check
      %p49 = pneg %p48
    $region19: #{tpu_custom_call.1} parent=1 // pred_check_branch
      %51 = sbr.rel (%p49) target = $region21
    $region20: #{tpu_custom_call.1} parent=1 // pred_region
      %52 = vst [vmem:[#allocation7] sm:$0xff] 0.0
    $region21: #{tpu_custom_call.1} parent=1 // pred_fallthru
      _
    %v53 = vld [vmem:[#allocation2] sm:$0xff]
    %v54 = vld [vmem:[#allocation5] sm:$0xff]
    %v55 = vmul.f32 %v53, %v54
    %v56 = vmul.f32 %v53, %v53
    %v57 = vmul.f32 %v54, %v54
    %s58 = scalar_lea.vmem [#allocation2], 8
    %v59 = vld [vmem:[%s58] sm:$0xff]
    %s60 = scalar_lea.vmem [#allocation5], 8
    %v61 = vld [vmem:[%s60] sm:$0xff]
    %v62 = vmul.f32 %v59, %v61
    %v63 = vadd.f32 %v55, %v62
    %v64 = vmul.f32 %v59, %v59
    %v65 = vadd.f32 %v56, %v64
    %v66 = vmul.f32 %v61, %v61
    %v67 = vadd.f32 %v57, %v66
    %s68 = scalar_lea.vmem [#allocation2], 16
    %v69 = vld [vmem:[%s68] sm:$0xff]
    %s70 = scalar_lea.vmem [#allocation5], 16
    %v71 = vld [vmem:[%s70] sm:$0xff]
    %v72 = vmul.f32 %v69, %v71
    %v73 = vadd.f32 %v63, %v72
    %v74 = vmul.f32 %v69, %v69
    %v75 = vadd.f32 %v65, %v74
    %v76 = vmul.f32 %v71, %v71
    %v77 = vadd.f32 %v67, %v76
    %v78 = vmul.f32 %v75, %v77
    %v79 = vmax.f32 %v78, 1e-16
    %v80 = vrsqrt.pop %v79
    %v81 = vmul.f32 %v73, %v80
    %v82 = vsub.f32 1.0, %v81
    %v83 = vrsqrt.pop %v82
    %v84 = vmul.f32 %v82, %v83
    %vm85 = vcmp.eq.f32.partialorder %v82, inf
    %v86 = vsel %vm85, %v82, %v84
    %vm87 = vcmp.eq.f32.partialorder %v82, 0.0
    %v88 = vand.u32 %v82, 2147483648
    %v89 = vsel %vm87, %v88, %v86
    %v90 = vadd.f32 %v81, 1.0
    %v91 = vrsqrt.pop %v90
    %v92 = vmul.f32 %v89, %v91
    %vm93 = vcmp.gt.f32.partialorder %v92, 2.4142137
    %vm94 = vcmp.gt.f32.partialorder %v92, 0.41421357
    %v95 = vsel %vm94, 0.7853982, 0.0
    %v96 = vsel %vm93, 1.5707964, %v95
    %v97 = vrcp.pop %v92
    %v98 = vmul.f32 -1.0, %v97
    %v99 = vsub.f32 %v92, 1.0
    %v100 = vadd.f32 %v92, 1.0
    %v101 = vrcp.pop %v100
    %v102 = vmul.f32 %v99, %v101
    %v103 = vsel %vm94, %v102, %v92
    %v104 = vsel %vm93, %v98, %v103
    %v105 = vmul.f32 %v104, %v104
    %v106 = vmul.f32 %v105, 0.080537446
    %v107 = vsub.f32 %v106, 0.13877685
    %v108 = vmul.f32 %v107, %v105
    %v109 = vadd.f32 %v108, 0.19977711
    %v110 = vmul.f32 %v109, %v105
    %v111 = vsub.f32 %v110, 0.3333295
    %v112 = vmul.f32 %v111, %v105
    %v113 = vmul.f32 %v112, %v104
    %v114 = vadd.f32 %v113, %v104
    %v115 = vadd.f32 %v96, %v114
    %v116 = vmul.f32 %v115, 2.0
    %v117 = vmul.f32 %v116, 57.29578
    %s118 = sadd.s32 0, 0
    %s119 = smul.u32 %s118, 8
    %v120 = vlaneseq
    %v121 = vshrl.u32 %v120, 7
    %v122 = vlaneseq
    %v123 = vand.u32 %v122, 127
    %v124 = vstv %s119
    %v125 = vadd.s32 %v124, %v121
    %v126 = vmul.u32 %v125, 128
    %v127 = vadd.s32 %v126, %v123
    %vm128 = vcmp.lt.s32.totalorder %v127, 8
    %v129 = vsel %vm128, %v117, 0.0
    %v130 = vld [vmem:[#allocation7] sm:$0xff]
    %131 = vadd.xlane.f32.xlu0 %v129
    %v132 = vpop.xlane.xlu0 %131
    %v133 = vadd.f32 %v130, %v132
    %134 = vst [vmem:[#allocation7] sm:$0xff] %v133
    // Predicated region
    $region22: #{tpu_custom_call.1} parent=1 // pred_check
      _
    $region23: #{tpu_custom_call.1} parent=1 // pred_check_branch
      %136 = sbr.rel (0) target = $region25
    $region24: #{tpu_custom_call.1} parent=1 // pred_region
      %s138 = ssub.s32 128, 128
      %139 = vsyncadd [#allocation4], %s138
      %s141 = sshll.u32 [#allocation7], 4
      %s142 = int_to_ptr.vmem [resolvable:$true] %s141
      %144 = dma.vmem_to_hbm [thread:$0]  %s142, 128, %s2, [#allocation4]
    $region25: #{tpu_custom_call.1} parent=1 // pred_fallthru
      _
    // Predicated region
    $region26: #{tpu_custom_call.1} parent=1 // pred_check
      _
    $region27: #{tpu_custom_call.1} parent=1 // pred_check_branch
      %146 = sbr.rel (0) target = $region29
    $region28: #{tpu_custom_call.1} parent=1 // pred_region
      %147 = dma.done [#allocation4], 128
    $region29: #{tpu_custom_call.1} parent=1 // pred_fallthru
      _
    %148 = vsyncpa [#allocation3], 1
    %149 = vsyncpa [#allocation6], 1
    %150 = vsyncpa [#allocation4], 1

</llo_original>
